<compile_context>
chip_gen: v7x
topology: tpu7x:2x2x1
jax: 0.10.0
libtpu: 0.0.40
codegen_flags: <defaults>
</compile_context>

<pallas_src>
import math

import jax
import jax.numpy as jnp
from jax.experimental import pallas as pl
from jax.experimental.pallas import tpu as pltpu

_LANE = 128  # vreg lane width


def make_pe_table(d_model: int, max_len: int = 5000) -> jnp.ndarray:
    """(max_len, d_model) sinusoidal PE buffer, exactly as in the PyTorch __init__."""
    position = jnp.arange(0, max_len, dtype=jnp.float32)[:, None]           # (max_len, 1)
    div_term = jnp.exp(
        jnp.arange(0, d_model, 2, dtype=jnp.float32)
        * -(math.log(10000.0) / d_model)
    )                                                                        # (ceil(D/2),)
    angles = position * div_term                                             # (max_len, ceil(D/2))
    pe = jnp.zeros((max_len, d_model), dtype=jnp.float32)
    pe = pe.at[:, 0::2].set(jnp.sin(angles))
    # Guard for odd d_model: pe[:, 1::2] has floor(D/2) columns.
    pe = pe.at[:, 1::2].set(jnp.cos(angles[:, : d_model // 2]))
    return pe                                                                # (max_len, d_model)


def prepare_pe(pe_table: jnp.ndarray, dtype) -> jnp.ndarray:
    """Init-time prep: cast to the activation dtype and flatten to (1, max_len*d_model).

    Doing this once removes a per-call slice+convert from the forward path.
    NOTE: for low-precision activations (bf16) the pre-cast add differs from
    PyTorch's f32-add by at most ~1 ulp of the activation dtype.
    """
    max_len, d_model = pe_table.shape
    return pe_table.astype(dtype).reshape(1, max_len * d_model)


def _pe_add_kernel(x_ref, pe_ref, o_ref):
    # x_ref / o_ref: (TB, TL) lane-dense tile; pe_ref: (1, TL), broadcasts over rows.
    o_ref[...] = x_ref[...] + pe_ref[...]


def _native_sublane(itemsize: int) -> int:
    # f32 -> 8, bf16 -> 16, int8/fp8 -> 32 (sub-32-bit dtypes pack along sublanes).
    return max(8, 32 // itemsize)


def _choose_tiles(B: int, SD: int, itemsize: int, target_tile_bytes: int = 2 << 20):
    """Pick (TB, TL) so the x tile is ~target_tile_bytes while obeying Mosaic rules
    (TB multiple of the dtype-native sublane or == B; TL multiple of 128 or == SD),
    and keep >=2 grid steps for non-trivial problems (v7x has 2 TensorCores)."""
    sub = _native_sublane(itemsize)
    TB = B if B < sub else sub

    # Size the lane axis against max(TB, sub) so the (1, TL) PE block's sublane
    # padding (sub rows per buffer) can't blow the VMEM budget when TB is small.
    max_tl = max(_LANE, (target_tile_bytes // (max(TB, sub) * itemsize) // _LANE) * _LANE)

    if SD <= max_tl:
        TL = SD  # whole lane axis in one tile
        # Short-sequence / large-batch: grow the sublane axis in dtype-native
        # multiples until the x tile reaches the byte target.
        if B > TB:
            want_tb = target_tile_bytes // max(1, TL * itemsize)
            want_tb = (want_tb // sub) * sub
            tb_cap = (B // sub) * sub
            TB = max(TB, min(max(want_tb, sub), tb_cap))
    else:
        TL = max_tl

    n_s, n_b = pl.cdiv(SD, TL), pl.cdiv(B, TB)

    # Keep at least 2 grid steps on non-trivial problems so both v7x TCs get work.
    if n_s * n_b < 2 and B * SD * itemsize >= (2 << 20):
        if TL >= 2 * _LANE:
            TL = max(_LANE, ((TL // 2) // _LANE) * _LANE)
        elif TB >= 2 * sub:
            TB = max(sub, ((TB // 2) // sub) * sub)
        n_s, n_b = pl.cdiv(SD, TL), pl.cdiv(B, TB)

    return TB, TL, n_s, n_b, sub


def positional_encoding_forward(
    x: jnp.ndarray, pe_flat: jnp.ndarray, *, target_tile_bytes: int = 2 << 20
) -> jnp.ndarray:
    """x: (B, S, D). pe_flat: (1, max_len*D) pre-cast buffer from prepare_pe().

    Returns x + pe[:S] broadcast over the batch.  x's buffer is donated to the
    output (input_output_aliases), so callers should not reuse x afterwards.
    """
    B, S, D = x.shape
    assert pe_flat.ndim == 2 and pe_flat.shape[0] == 1
    total = pe_flat.shape[1]
    assert total % D == 0, "pe buffer length must be a multiple of d_model"
    max_len = total // D
    assert S <= max_len, f"sequence length {S} exceeds PE buffer max_len {max_len}"
    assert pe_flat.dtype == x.dtype, "prepare_pe() with the activation dtype first"

    SD = S * D
    x_flat = x.reshape(B, SD)                                   # (B, S*D), lane-dense
    itemsize = jnp.dtype(x.dtype).itemsize
    TB, TL, n_s, n_b, sub = _choose_tiles(B, SD, itemsize, target_tile_bytes)

    # Explicit VMEM budget (double-buffered x + out + sublane-padded PE) + headroom.
    vmem_need = 2 * TL * itemsize * (2 * TB + sub)
    vmem_limit = int(min(max(vmem_need + (4 << 20), 16 << 20), 32 << 20))

    out_flat = pl.pallas_call(
        _pe_add_kernel,
        out_shape=jax.ShapeDtypeStruct((B, SD), x.dtype),
        grid_spec=pltpu.PrefetchScalarGridSpec(
            num_scalar_prefetch=0,
            # Batch is the innermost (fastest) grid axis: the PE tile's block index
            # is unchanged across it, so Pallas keeps it resident in VMEM instead of
            # re-DMAing it per batch tile (PE HBM traffic ~ S*D, not B*S*D).
            grid=(n_s, n_b),
            in_specs=[
                pl.BlockSpec((TB, TL), lambda s, b: (b, s)),   # x tile
                pl.BlockSpec((1, TL), lambda s, b: (0, s)),    # shared PE tile (:S implicit)
            ],
            out_specs=pl.BlockSpec((TB, TL), lambda s, b: (b, s)),
        ),
        compiler_params=pltpu.CompilerParams(
            dimension_semantics=("parallel", "parallel"),
            vmem_limit_bytes=vmem_limit,
        ),
        cost_estimate=pl.CostEstimate(
            flops=B * SD,
            transcendentals=0,
            bytes_accessed=(2 * B * SD + SD) * itemsize,
        ),
        input_output_aliases={0: 0},   # donate x's HBM buffer to the output
    )(x_flat, pe_flat)

    return out_flat.reshape(B, S, D)


if __name__ == "__main__":
    # Small shapes consistent with the module: batch=2, seq=8, d_model=32.
    B, S, D = 2, 8, 32
    MAX_LEN = 64  # module default is 5000; keep the demo buffer small

    key = jax.random.PRNGKey(0)
    x = jax.random.normal(key, (B, S, D), dtype=jnp.float32)

    pe_table = make_pe_table(D, max_len=MAX_LEN)        # "register_buffer" equivalent
    pe_flat = prepare_pe(pe_table, x.dtype)             # init-time cast + flatten

    # Reference in plain JAX (same formula as the PyTorch forward).  Computed and
    # materialized BEFORE the kernel call since x's buffer is donated to the output.
    ref = jax.block_until_ready(x + pe_table[None, :S, :])

    out = positional_encoding_forward(x, pe_flat)
    out = jax.block_until_ready(out)

    assert out.shape == (B, S, D)
    assert jnp.allclose(out, ref, atol=1e-6), "mismatch vs reference"

    print("KERNEL_OK")
</pallas_src>

<mosaic_0001>
module attributes {stable_mosaic.version = 11 : i64} {
  func.func @_pe_add_kernel(%arg0: i32, %arg1: i32, %arg2: memref<2x256xf32, #tpu.memory_space<vmem>>, %arg3: memref<1x256xf32, #tpu.memory_space<vmem>>, %arg4: memref<2x256xf32, #tpu.memory_space<vmem>>) attributes {dimension_semantics = [#tpu.dimension_semantics<parallel>, #tpu.dimension_semantics<parallel>], iteration_bounds = array<i64: 1, 1>, scalar_prefetch = 0 : i64, scratch_operands = 0 : i64, tpu.core_type = #tpu.core_type<tc>, window_params = [{transform_indices = @transform_0, window_bounds = array<i64: 2, 256>}, {transform_indices = @transform_1, window_bounds = array<i64: 1, 256>}, {transform_indices = @transform_2, window_bounds = array<i64: 2, 256>}]} {
    %c0 = arith.constant 0 : index
    %c0_0 = arith.constant 0 : index
    %0 = vector.load %arg2[%c0, %c0_0] : memref<2x256xf32, #tpu.memory_space<vmem>>, vector<2x256xf32>
    %c0_1 = arith.constant 0 : index
    %c0_2 = arith.constant 0 : index
    %1 = vector.load %arg3[%c0_1, %c0_2] : memref<1x256xf32, #tpu.memory_space<vmem>>, vector<1x256xf32>
    %2 = vector.broadcast %1 : vector<1x256xf32> to vector<2x256xf32>
    %3 = arith.addf %0, %2 : vector<2x256xf32>
    %c0_3 = arith.constant 0 : index
    %c0_4 = arith.constant 0 : index
    %4 = vector.load %arg4[%c0_3, %c0_4] : memref<2x256xf32, #tpu.memory_space<vmem>>, vector<2x256xf32>
    tpu.vector_store %arg4[%c0_3, %c0_4], %3 {strides = array<i32>} : memref<2x256xf32, #tpu.memory_space<vmem>>, vector<2x256xf32>,
    return
  }
  func.func @transform_0(%arg0: i32, %arg1: i32) -> (i32, i32) {
    %c0_i32 = arith.constant 0 : i32
    return %arg1, %arg0 : i32, i32
  }
  func.func @transform_1(%arg0: i32, %arg1: i32) -> (i32, i32) {
    %c0_i32 = arith.constant 0 : i32
    %c0_i32_0 = arith.constant 0 : i32
    return %c0_i32, %arg0 : i32, i32
  }
  func.func @transform_2(%arg0: i32, %arg1: i32) -> (i32, i32) {
    %c0_i32 = arith.constant 0 : i32
    return %arg1, %arg0 : i32, i32
  }
}

</mosaic_0001>

<llo_original>
// kernel: tpu_custom_call.1
$region0: #{tpu_custom_call.1}
  #allocation0 [shape = 'u32[]', space=smem, size = 0x4, offset = 0x4, fixed_abs, tag = 'smem constant byte address 0x4 - core index']
  #allocation1 [shape = 'u32[144,128]{1,0:T(1,128)}', space=vmem, size = 0x12000, scoped, tag = 'internal scratch']
  %s0 = inlined_call_operand.hbm [shape: f32[2,256], index: 0, kind: input, shape index: {}, may-alias: {0,2}]
  %s1 = inlined_call_operand.hbm [shape: f32[1,2048], index: 1, kind: input, shape index: {}]
  %s2 = inlined_call_operand.hbm [shape: f32[2,256], index: 2, kind: output, shape index: {}, may-alias: {0,2}]
  %s3 = sld [smem:[#allocation0]]
  $region26: #{tpu_custom_call.1} parent=0
    _
  %s5 = ssub.s32 1, %s3
  %s6 = scalar_select 0, %s5, %s3
  $region1: #{tpu_custom_call.1} parent=0
    #allocation2 [shape = 'u8[2048]{0}', space=vmem, size = 0x800, scoped, tag = 'input window, operand 0, single buffered']
    #allocation3 [shape = 's32[1]{0}', space=sflag, size = 0x4, scoped, tag = 'scoped memory for tpu_custom_call.1']
    #allocation4 [shape = 's32[1]{0}', space=sflag, size = 0x4, scoped, tag = 'scoped memory for tpu_custom_call.1']
    #allocation5 [shape = 'u8[1024]{0}', space=vmem, size = 0x400, scoped, tag = 'input window, operand 1, single buffered']
    #allocation6 [shape = 's32[1]{0}', space=sflag, size = 0x4, scoped, tag = 'scoped memory for tpu_custom_call.1']
    #allocation7 [shape = 'u8[2048]{0}', space=vmem, size = 0x800, scoped, tag = 'output window, operand 0, single buffered']
    %7 = vsyncpa [#allocation3], 0
    %8 = vsyncpa [#allocation6], 0
    %9 = vsyncpa [#allocation4], 0
    // Predicated region
    $region2: #{tpu_custom_call.1} parent=1 // pred_check
      _
    $region3: #{tpu_custom_call.1} parent=1 // pred_check_branch
      %11 = sbr.rel (0) target = $region5
    $region4: #{tpu_custom_call.1} parent=1 // pred_region
      %s13 = ssub.s32 64, 64
      %14 = vsyncadd [#allocation3], %s13
      %s16 = sshll.u32 [#allocation2], 4
      %s17 = int_to_ptr.vmem [resolvable:$true] %s16
      %19 = dma.hbm_to_vmem [thread:$0]  %s0, 64, %s17, [#allocation3]
    $region5: #{tpu_custom_call.1} parent=1 // pred_fallthru
      _
    // Predicated region
    $region6: #{tpu_custom_call.1} parent=1 // pred_check
      _
    $region7: #{tpu_custom_call.1} parent=1 // pred_check_branch
      %21 = sbr.rel (0) target = $region9
    $region8: #{tpu_custom_call.1} parent=1 // pred_region
      %s23 = ssub.s32 32, 32
      %24 = vsyncadd [#allocation6], %s23
      %s26 = sshll.u32 [#allocation5], 4
      %s27 = int_to_ptr.vmem [resolvable:$true] %s26
      %29 = dma.hbm_to_vmem [thread:$0]  %s1, 32, %s27, [#allocation6]
    $region9: #{tpu_custom_call.1} parent=1 // pred_fallthru
      _
    // Predicated region
    $region10: #{tpu_custom_call.1} parent=1 // pred_check
      _
    $region11: #{tpu_custom_call.1} parent=1 // pred_check_branch
      %31 = sbr.rel (0) target = $region13
    $region12: #{tpu_custom_call.1} parent=1 // pred_region
      %32 = dma.done [#allocation3], 64
    $region13: #{tpu_custom_call.1} parent=1 // pred_fallthru
      _
    // Predicated region
    $region14: #{tpu_custom_call.1} parent=1 // pred_check
      _
    $region15: #{tpu_custom_call.1} parent=1 // pred_check_branch
      %34 = sbr.rel (0) target = $region17
    $region16: #{tpu_custom_call.1} parent=1 // pred_region
      %35 = dma.done [#allocation6], 32
    $region17: #{tpu_custom_call.1} parent=1 // pred_fallthru
      _
    %v36 = vld [vmem:[#allocation2] sm:$0xf]
    %v37 = vld [vmem:[#allocation5] sm:$0x3]
    %v39 = vlaneseq
    %v40 = vshrl.u32 %v39, 7
    %v41 = vsub.s32 0, %v40
    %v42 = vrot.slane %v37, %v41
    %v43 = vlaneseq
    %v44 = vshrl.u32 %v43, 7
    %v45 = vsub.s32 1, %v44
    %v46 = vrot.slane %v37, %v45
    %v47 = vcombine.low %v42, %v46
    %v49 = vunpack.c.l.s4 1983009808
    %v50 = vunpack.c.0.s8 %v49
    %v51 = vlaneseq
    %v52 = vshrl.u32 %v51, 7
    %v53 = vsub.s32 %v50, %v52
    %v54 = vrot.slane %v47, %v53
    %v56 = vadd.f32 %v36, %v54
    %57 = vst [vmem:[#allocation7] sm:$0xf] %v56
    // Predicated region
    $region18: #{tpu_custom_call.1} parent=1 // pred_check
      _
    $region19: #{tpu_custom_call.1} parent=1 // pred_check_branch
      %59 = sbr.rel (0) target = $region21
    $region20: #{tpu_custom_call.1} parent=1 // pred_region
      %s61 = ssub.s32 64, 64
      %62 = vsyncadd [#allocation4], %s61
      %s64 = sshll.u32 [#allocation7], 4
      %s65 = int_to_ptr.vmem [resolvable:$true] %s64
      %67 = dma.vmem_to_hbm [thread:$0]  %s65, 64, %s2, [#allocation4]
    $region21: #{tpu_custom_call.1} parent=1 // pred_fallthru
      _
    // Predicated region
    $region22: #{tpu_custom_call.1} parent=1 // pred_check
      _
    $region23: #{tpu_custom_call.1} parent=1 // pred_check_branch
      %69 = sbr.rel (0) target = $region25
    $region24: #{tpu_custom_call.1} parent=1 // pred_region
      %70 = dma.done [#allocation4], 64
    $region25: #{tpu_custom_call.1} parent=1 // pred_fallthru
      _
    %71 = vsyncpa [#allocation3], 1
    %72 = vsyncpa [#allocation6], 1
    %73 = vsyncpa [#allocation4], 1

</llo_original>
